<compile_context>
chip_gen: v6e
topology: v6e:2x2x1
jax: 0.10.0
libtpu: 0.0.40
codegen_flags: <defaults>
</compile_context>

<pallas_src>
import jax
import jax.numpy as jnp
from jax.experimental import pallas as pl
from jax.experimental.pallas import tpu as pltpu  # noqa: F401  (TPU backend)

# Logical model sizes (Linear_QNet.__init__): n_observation -> 128 -> 256 -> n_action
N_OBS = 16      # n_observation (small synthetic choice)
H1 = 128
H2 = 256
N_ACT = 4       # n_action (small synthetic choice)
BATCH = 8       # logical batch used by the example

# Lane/MXU-friendly padded sizes (multiples of 128 on every lane dim).
K_PAD = 128     # padded n_observation
N_PAD = 128     # padded n_action
M_PAD = 128     # padded batch rows per pallas_call


def qnet_kernel(x_ref, w1_ref, b1_ref, w2_ref, b2_ref, w3_ref, b3_ref, o_ref):
    # layer1 + ReLU  (bf16 operands, f32 accumulation on the MXU)
    h1 = jnp.dot(x_ref[...], w1_ref[...], preferred_element_type=jnp.float32)
    h1 = jnp.maximum(h1 + b1_ref[...], 0.0)
    # layer2 + ReLU
    h2 = jnp.dot(h1.astype(jnp.bfloat16), w2_ref[...],
                 preferred_element_type=jnp.float32)
    h2 = jnp.maximum(h2 + b2_ref[...], 0.0)
    # layer3 (no activation); 128-wide lane-dense output, padded cols are zero
    out = jnp.dot(h2.astype(jnp.bfloat16), w3_ref[...],
                  preferred_element_type=jnp.float32)
    o_ref[...] = (out + b3_ref[...]).astype(o_ref.dtype)


def _full_spec(shape):
    # Whole-array block, single grid point.
    return pl.BlockSpec(shape, lambda: (0,) * len(shape))


def linear_qnet_forward(x, params):
    """x: [B, N_OBS] float32 (B <= M_PAD). Returns [B, N_ACT] float32."""
    w1, b1, w2, b2, w3, b3 = params   # padded, bf16 weights / f32 biases
    B = x.shape[0]

    # Pad batch and the layer-1 K dim so every operand is (8,128)-aligned and
    # all loads are unmasked.  Padded entries are zero.
    x_pad = jnp.zeros((M_PAD, K_PAD), jnp.bfloat16)
    x_pad = x_pad.at[:B, :N_OBS].set(x.astype(jnp.bfloat16))

    flops = 2 * M_PAD * (K_PAD * H1 + H1 * H2 + H2 * N_PAD)
    bytes_accessed = (
        x_pad.size * 2
        + w1.size * 2 + w2.size * 2 + w3.size * 2      # bf16 weights
        + b1.size * 4 + b2.size * 4 + b3.size * 4      # f32 biases
        + M_PAD * N_PAD * 4                            # f32 output
    )

    out_pad = pl.pallas_call(
        qnet_kernel,
        out_shape=jax.ShapeDtypeStruct((M_PAD, N_PAD), jnp.float32),
        grid=(),  # ~90 KB total: everything fits in VMEM in one invocation
        in_specs=[
            _full_spec(x_pad.shape),
            _full_spec(w1.shape), _full_spec(b1.shape),
            _full_spec(w2.shape), _full_spec(b2.shape),
            _full_spec(w3.shape), _full_spec(b3.shape),
        ],
        out_specs=_full_spec((M_PAD, N_PAD)),
        cost_estimate=pl.CostEstimate(
            flops=flops, transcendentals=0, bytes_accessed=bytes_accessed),
    )(x_pad, w1, b1, w2, b2, w3, b3)

    # Slice back to the logical output shape.
    return out_pad[:B, :N_ACT]


def init_params(key):
    """PyTorch nn.Linear default init: U(-1/sqrt(fan_in), 1/sqrt(fan_in)).

    Weights are stored transposed ([in, out]), cast to bf16, and padded to
    lane-dense shapes with zeros.  Biases stay f32 (added to f32 accumulators).
    """
    def linear_init(k, fan_in, fan_out):
        kw, kb = jax.random.split(k)
        bound = 1.0 / jnp.sqrt(fan_in)
        w = jax.random.uniform(kw, (fan_in, fan_out), jnp.float32, -bound, bound)
        b = jax.random.uniform(kb, (1, fan_out), jnp.float32, -bound, bound)
        return w, b

    k1, k2, k3 = jax.random.split(key, 3)
    w1, b1 = linear_init(k1, N_OBS, H1)
    w2, b2 = linear_init(k2, H1, H2)
    w3, b3 = linear_init(k3, H2, N_ACT)

    # Zero-padded, bf16 weights; zero-padded f32 bias for the output layer.
    w1_p = jnp.zeros((K_PAD, H1), jnp.bfloat16).at[:N_OBS, :].set(
        w1.astype(jnp.bfloat16))
    w2_p = w2.astype(jnp.bfloat16)                       # already [128, 256]
    w3_p = jnp.zeros((H2, N_PAD), jnp.bfloat16).at[:, :N_ACT].set(
        w3.astype(jnp.bfloat16))
    b3_p = jnp.zeros((1, N_PAD), jnp.float32).at[:, :N_ACT].set(b3)
    return (w1_p, b1, w2_p, b2, w3_p, b3_p)


if __name__ == "__main__":
    key = jax.random.PRNGKey(0)
    k_params, k_x = jax.random.split(key)
    params = init_params(k_params)
    x = jax.random.normal(k_x, (BATCH, N_OBS), jnp.float32)

    out = linear_qnet_forward(x, params)
    out = jax.block_until_ready(out)

    # Reference in plain JAX using the *same* bf16 weights / f32 accumulation
    # (padding with zeros does not change the math).
    w1, b1, w2, b2, w3, b3 = params
    w1u = w1[:N_OBS, :]
    w3u = w3[:, :N_ACT]
    b3u = b3[:, :N_ACT]
    xb = x.astype(jnp.bfloat16)
    h = jnp.maximum(jnp.dot(xb, w1u, preferred_element_type=jnp.float32) + b1, 0.0)
    h = jnp.maximum(jnp.dot(h.astype(jnp.bfloat16), w2,
                            preferred_element_type=jnp.float32) + b2, 0.0)
    ref = jnp.dot(h.astype(jnp.bfloat16), w3u,
                  preferred_element_type=jnp.float32) + b3u

    assert out.shape == (BATCH, N_ACT)
    assert jnp.allclose(out, ref, atol=1e-3, rtol=1e-3)

    print("KERNEL_OK")
</pallas_src>

<mosaic_0001>
module attributes {stable_mosaic.version = 11 : i64} {
  func.func @qnet_kernel(%arg0: memref<128x128xbf16, #tpu.memory_space<vmem>>, %arg1: memref<128x128xbf16, #tpu.memory_space<vmem>>, %arg2: memref<1x128xf32, #tpu.memory_space<vmem>>, %arg3: memref<128x256xbf16, #tpu.memory_space<vmem>>, %arg4: memref<1x256xf32, #tpu.memory_space<vmem>>, %arg5: memref<256x128xbf16, #tpu.memory_space<vmem>>, %arg6: memref<1x128xf32, #tpu.memory_space<vmem>>, %arg7: memref<128x128xf32, #tpu.memory_space<vmem>>) attributes {dimension_semantics = [], scalar_prefetch = 0 : i64, scratch_operands = 0 : i64, tpu.core_type = #tpu.core_type<tc>} {
    %c0 = arith.constant 0 : index
    %c0_0 = arith.constant 0 : index
    %0 = vector.load %arg0[%c0, %c0_0] : memref<128x128xbf16, #tpu.memory_space<vmem>>, vector<128x128xbf16>
    %c0_1 = arith.constant 0 : index
    %c0_2 = arith.constant 0 : index
    %1 = vector.load %arg1[%c0_1, %c0_2] : memref<128x128xbf16, #tpu.memory_space<vmem>>, vector<128x128xbf16>
    %cst = arith.constant dense<0.000000e+00> : vector<128x128xf32>
    %2 = tpu.matmul %0, %1, %cst {dimension_numbers = #tpu.dot_dimension_numbers<[1], [0], [0], [1], [0, 0, 1, 1], [], []>} : vector<128x128xbf16>, vector<128x128xbf16>, vector<128x128xf32> -> vector<128x128xf32>
    %c0_3 = arith.constant 0 : index
    %c0_4 = arith.constant 0 : index
    %3 = vector.load %arg2[%c0_3, %c0_4] : memref<1x128xf32, #tpu.memory_space<vmem>>, vector<1x128xf32>
    %4 = vector.broadcast %3 : vector<1x128xf32> to vector<128x128xf32>
    %5 = arith.addf %2, %4 : vector<128x128xf32>
    %cst_5 = arith.constant 0.000000e+00 : f32
    %6 = vector.broadcast %cst_5 : f32 to vector<128x128xf32>
    %7 = arith.maximumf %5, %6 : vector<128x128xf32>
    %8 = arith.truncf %7 : vector<128x128xf32> to vector<128x128xbf16>
    %c0_6 = arith.constant 0 : index
    %c0_7 = arith.constant 0 : index
    %9 = vector.load %arg3[%c0_6, %c0_7] : memref<128x256xbf16, #tpu.memory_space<vmem>>, vector<128x256xbf16>
    %cst_8 = arith.constant dense<0.000000e+00> : vector<128x256xf32>
    %10 = tpu.matmul %8, %9, %cst_8 {dimension_numbers = #tpu.dot_dimension_numbers<[1], [0], [0], [1], [0, 0, 1, 1], [], []>} : vector<128x128xbf16>, vector<128x256xbf16>, vector<128x256xf32> -> vector<128x256xf32>
    %c0_9 = arith.constant 0 : index
    %c0_10 = arith.constant 0 : index
    %11 = vector.load %arg4[%c0_9, %c0_10] : memref<1x256xf32, #tpu.memory_space<vmem>>, vector<1x256xf32>
    %12 = vector.broadcast %11 : vector<1x256xf32> to vector<128x256xf32>
    %13 = arith.addf %10, %12 : vector<128x256xf32>
    %cst_11 = arith.constant 0.000000e+00 : f32
    %14 = vector.broadcast %cst_11 : f32 to vector<128x256xf32>
    %15 = arith.maximumf %13, %14 : vector<128x256xf32>
    %16 = arith.truncf %15 : vector<128x256xf32> to vector<128x256xbf16>
    %c0_12 = arith.constant 0 : index
    %c0_13 = arith.constant 0 : index
    %17 = vector.load %arg5[%c0_12, %c0_13] : memref<256x128xbf16, #tpu.memory_space<vmem>>, vector<256x128xbf16>
    %cst_14 = arith.constant dense<0.000000e+00> : vector<128x128xf32>
    %18 = tpu.matmul %16, %17, %cst_14 {dimension_numbers = #tpu.dot_dimension_numbers<[1], [0], [0], [1], [0, 0, 1, 1], [], []>} : vector<128x256xbf16>, vector<256x128xbf16>, vector<128x128xf32> -> vector<128x128xf32>
    %c0_15 = arith.constant 0 : index
    %c0_16 = arith.constant 0 : index
    %19 = vector.load %arg6[%c0_15, %c0_16] : memref<1x128xf32, #tpu.memory_space<vmem>>, vector<1x128xf32>
    %20 = vector.broadcast %19 : vector<1x128xf32> to vector<128x128xf32>
    %21 = arith.addf %18, %20 : vector<128x128xf32>
    %c0_17 = arith.constant 0 : index
    %c0_18 = arith.constant 0 : index
    %22 = vector.load %arg7[%c0_17, %c0_18] : memref<128x128xf32, #tpu.memory_space<vmem>>, vector<128x128xf32>
    tpu.vector_store %arg7[%c0_17, %c0_18], %21 {strides = array<i32>} : memref<128x128xf32, #tpu.memory_space<vmem>>, vector<128x128xf32>,
    return
  }
}

</mosaic_0001>

<llo_original>
// kernel: tpu_custom_call.1
$region0: #{tpu_custom_call.1}
  #allocation0 [shape = 'u32[]', space=smem, size = 0x4, offset = 0x4, fixed_abs, tag = 'smem constant byte address 0x4 - core index']
  #allocation1 [shape = 'u32[144,128]{1,0:T(1,128)}', space=vmem, size = 0x12000, scoped, tag = 'internal scratch']
  %s0 = inlined_call_operand.hbm [shape: bf16[128,128], index: 0, kind: input, shape index: {}]
  %s1 = inlined_call_operand.hbm [shape: bf16[128,128], index: 1, kind: input, shape index: {}]
  %s2 = inlined_call_operand.vmem [shape: f32[1,128], index: 2, kind: input, shape index: {}]
  %s3 = inlined_call_operand.hbm [shape: bf16[128,256], index: 3, kind: input, shape index: {}]
  %s4 = inlined_call_operand.vmem [shape: f32[1,256], index: 4, kind: input, shape index: {}]
  %s5 = inlined_call_operand.hbm [shape: bf16[256,128], index: 5, kind: input, shape index: {}]
  %s6 = inlined_call_operand.vmem [shape: f32[1,128], index: 6, kind: input, shape index: {}]
  %s7 = inlined_call_operand.hbm [shape: f32[128,128], index: 7, kind: output, shape index: {}]
  %s8 = sld [smem:[#allocation0]]
  $region54: #{tpu_custom_call.1} parent=0
    _
  %s10 = ssub.s32 1, %s8
  %s11 = scalar_select 0, %s10, %s8
  $region1: #{tpu_custom_call.1} parent=0
    #allocation2 [shape = 'u8[32768]{0}', space=vmem, size = 0x8000, scoped, tag = 'input window, operand 0, single buffered']
    #allocation3 [shape = 's32[1]{0}', space=sflag, size = 0x4, scoped, tag = 'scoped memory for tpu_custom_call.1']
    #allocation4 [shape = 's32[1]{0}', space=sflag, size = 0x4, scoped, tag = 'scoped memory for tpu_custom_call.1']
    #allocation5 [shape = 'u8[32768]{0}', space=vmem, size = 0x8000, scoped, tag = 'input window, operand 1, single buffered']
    #allocation6 [shape = 's32[1]{0}', space=sflag, size = 0x4, scoped, tag = 'scoped memory for tpu_custom_call.1']
    #allocation7 [shape = 'u8[65536]{0}', space=vmem, size = 0x10000, scoped, tag = 'input window, operand 3, single buffered']
    #allocation8 [shape = 'u8[65536]{0}', space=vmem, size = 0x10000, scoped, tag = 'input window, operand 5, single buffered']
    #allocation9 [shape = 's32[1]{0}', space=sflag, size = 0x4, scoped, tag = 'scoped memory for tpu_custom_call.1']
    #allocation10 [shape = 'u8[65536]{0}', space=vmem, size = 0x10000, scoped, tag = 'output window, operand 0, single buffered']
    %12 = vsyncpa [#allocation3], 0
    %13 = vsyncpa [#allocation6], 0
    %14 = vsyncpa [#allocation9], 0
    %15 = vsyncpa [#allocation4], 0
    // Predicated region
    $region2: #{tpu_custom_call.1} parent=1 // pred_check
      _
    $region3: #{tpu_custom_call.1} parent=1 // pred_check_branch
      %17 = sbr.rel (0) target = $region5
    $region4: #{tpu_custom_call.1} parent=1 // pred_region
      %s19 = ssub.s32 1024, 1024
      %20 = vsyncadd [#allocation3], %s19
      %s21 = sshll.u32 [#allocation2], 4
      %s22 = int_to_ptr.vmem [resolvable:$true] %s21
      %27 = dma.hbm_to_vmem [thread:$0]  %s0, 1024, %s22, [#allocation3], 64, 64, 4
    $region5: #{tpu_custom_call.1} parent=1 // pred_fallthru
      _
    // Predicated region
    $region6: #{tpu_custom_call.1} parent=1 // pred_check
      _
    $region7: #{tpu_custom_call.1} parent=1 // pred_check_branch
      %29 = sbr.rel (0) target = $region9
    $region8: #{tpu_custom_call.1} parent=1 // pred_region
      %s31 = ssub.s32 1024, 1024
      %32 = vsyncadd [#allocation6], %s31
      %s33 = sshll.u32 [#allocation5], 4
      %s34 = int_to_ptr.vmem [resolvable:$true] %s33
      %39 = dma.hbm_to_vmem [thread:$0]  %s1, 1024, %s34, [#allocation6], 64, 64, 4
    $region9: #{tpu_custom_call.1} parent=1 // pred_fallthru
      _
    // Predicated region
    $region10: #{tpu_custom_call.1} parent=1 // pred_check
      _
    $region11: #{tpu_custom_call.1} parent=1 // pred_check_branch
      %41 = sbr.rel (0) target = $region13
    $region12: #{tpu_custom_call.1} parent=1 // pred_region
      _
    $region13: #{tpu_custom_call.1} parent=1 // pred_fallthru
      _
    // Predicated region
    $region14: #{tpu_custom_call.1} parent=1 // pred_check
      _
    $region15: #{tpu_custom_call.1} parent=1 // pred_check_branch
      %43 = sbr.rel (0) target = $region17
    $region16: #{tpu_custom_call.1} parent=1 // pred_region
      %s45 = ssub.s32 2048, 2048
      %46 = vsyncadd [#allocation6], %s45
      %s47 = sshll.u32 [#allocation7], 4
      %s48 = int_to_ptr.vmem [resolvable:$true] %s47
      %53 = dma.hbm_to_vmem [thread:$0]  %s3, 2048, %s48, [#allocation6], 128, 128, 8
    $region17: #{tpu_custom_call.1} parent=1 // pred_fallthru
      _
    // Predicated region
    $region18: #{tpu_custom_call.1} parent=1 // pred_check
      _
    $region19: #{tpu_custom_call.1} parent=1 // pred_check_branch
      %55 = sbr.rel (0) target = $region21
    $region20: #{tpu_custom_call.1} parent=1 // pred_region
      _
    $region21: #{tpu_custom_call.1} parent=1 // pred_fallthru
      _
    // Predicated region
    $region22: #{tpu_custom_call.1} parent=1 // pred_check
      _
    $region23: #{tpu_custom_call.1} parent=1 // pred_check_branch
      %57 = sbr.rel (0) target = $region25
    $region24: #{tpu_custom_call.1} parent=1 // pred_region
      %s59 = ssub.s32 2048, 2048
      %60 = vsyncadd [#allocation9], %s59
      %s61 = sshll.u32 [#allocation8], 4
      %s62 = int_to_ptr.vmem [resolvable:$true] %s61
      %67 = dma.hbm_to_vmem [thread:$0]  %s5, 2048, %s62, [#allocation9], 64, 64, 4
    $region25: #{tpu_custom_call.1} parent=1 // pred_fallthru
      _
    // Predicated region
    $region26: #{tpu_custom_call.1} parent=1 // pred_check
      _
    $region27: #{tpu_custom_call.1} parent=1 // pred_check_branch
      %69 = sbr.rel (0) target = $region29
    $region28: #{tpu_custom_call.1} parent=1 // pred_region
      _
    $region29: #{tpu_custom_call.1} parent=1 // pred_fallthru
      _
    // Predicated region
    $region30: #{tpu_custom_call.1} parent=1 // pred_check
      _
    $region31: #{tpu_custom_call.1} parent=1 // pred_check_branch
      %71 = sbr.rel (0) target = $region33
    $region32: #{tpu_custom_call.1} parent=1 // pred_region
      %72 = dma.done [#allocation3], 1024
    $region33: #{tpu_custom_call.1} parent=1 // pred_fallthru
      _
    // Predicated region
    $region34: #{tpu_custom_call.1} parent=1 // pred_check
      _
    $region35: #{tpu_custom_call.1} parent=1 // pred_check_branch
      %74 = sbr.rel (0) target = $region37
    $region36: #{tpu_custom_call.1} parent=1 // pred_region
      %75 = dma.done [#allocation6], 1024
    $region37: #{tpu_custom_call.1} parent=1 // pred_fallthru
      _
    // Predicated region
    $region38: #{tpu_custom_call.1} parent=1 // pred_check
      _
    $region39: #{tpu_custom_call.1} parent=1 // pred_check_branch
      %77 = sbr.rel (0) target = $region41
    $region40: #{tpu_custom_call.1} parent=1 // pred_region
      %78 = dma.done [#allocation6], 2048
    $region41: #{tpu_custom_call.1} parent=1 // pred_fallthru
      _
    // Predicated region
    $region42: #{tpu_custom_call.1} parent=1 // pred_check
      _
    $region43: #{tpu_custom_call.1} parent=1 // pred_check_branch
      %80 = sbr.rel (0) target = $region45
    $region44: #{tpu_custom_call.1} parent=1 // pred_region
      %81 = dma.done [#allocation9], 2048
    $region45: #{tpu_custom_call.1} parent=1 // pred_fallthru
      _
    %v83 = vld [vmem:[#allocation2] sm:$0xf]
    %v84 = vld [vmem:[#allocation2 + $0x4] sm:$0xf]
    %v85 = vld [vmem:[#allocation2 + $0x8] sm:$0xf]
    %v86 = vld [vmem:[#allocation2 + $0xc] sm:$0xf]
    %v87 = vld [vmem:[#allocation2 + $0x10] sm:$0xf]
    %v88 = vld [vmem:[#allocation2 + $0x14] sm:$0xf]
    %v89 = vld [vmem:[#allocation2 + $0x18] sm:$0xf]
    %v90 = vld [vmem:[#allocation2 + $0x1c] sm:$0xf]
    %v91 = vld [vmem:[#allocation2 + $0x20] sm:$0xf]
    %v92 = vld [vmem:[#allocation2 + $0x24] sm:$0xf]
    %v93 = vld [vmem:[#allocation2 + $0x28] sm:$0xf]
    %v94 = vld [vmem:[#allocation2 + $0x2c] sm:$0xf]
    %v95 = vld [vmem:[#allocation2 + $0x30] sm:$0xf]
    %v96 = vld [vmem:[#allocation2 + $0x34] sm:$0xf]
    %v97 = vld [vmem:[#allocation2 + $0x38] sm:$0xf]
    %v98 = vld [vmem:[#allocation2 + $0x3c] sm:$0xf]
    %v99 = vld [vmem:[#allocation5] sm:$0xf]
    %v100 = vld [vmem:[#allocation5 + $0x4] sm:$0xf]
    %v101 = vld [vmem:[#allocation5 + $0x8] sm:$0xf]
    %v102 = vld [vmem:[#allocation5 + $0xc] sm:$0xf]
    %v103 = vld [vmem:[#allocation5 + $0x10] sm:$0xf]
    %v104 = vld [vmem:[#allocation5 + $0x14] sm:$0xf]
    %v105 = vld [vmem:[#allocation5 + $0x18] sm:$0xf]
    %v106 = vld [vmem:[#allocation5 + $0x1c] sm:$0xf]
    %v107 = vld [vmem:[#allocation5 + $0x20] sm:$0xf]
    %v108 = vld [vmem:[#allocation5 + $0x24] sm:$0xf]
    %v109 = vld [vmem:[#allocation5 + $0x28] sm:$0xf]
    %v110 = vld [vmem:[#allocation5 + $0x2c] sm:$0xf]
    %v111 = vld [vmem:[#allocation5 + $0x30] sm:$0xf]
    %v112 = vld [vmem:[#allocation5 + $0x34] sm:$0xf]
    %v113 = vld [vmem:[#allocation5 + $0x38] sm:$0xf]
    %v114 = vld [vmem:[#allocation5 + $0x3c] sm:$0xf]
    %v115 = vld [vmem:[%s2] sm:$0x1]
    %v117 = vlaneseq
    %v118 = vshrl.u32 %v117, 7
    %v119 = vsub.s32 0, %v118
    %v120 = vrot.slane %v115, %v119
    %v138 = vunpack.c.l.b16 %v83
    %v139 = vunpack.c.l.b16 %v84
    %v140 = vunpack.c.l.b16 %v85
    %v141 = vunpack.c.l.b16 %v86
    %v142 = vunpack.c.l.b16 %v87
    %v143 = vunpack.c.l.b16 %v88
    %v144 = vunpack.c.l.b16 %v89
    %v145 = vunpack.c.l.b16 %v90
    %v146 = vunpack.c.l.b16 %v91
    %v147 = vunpack.c.l.b16 %v92
    %v148 = vunpack.c.l.b16 %v93
    %v149 = vunpack.c.l.b16 %v94
    %v150 = vunpack.c.l.b16 %v95
    %v151 = vunpack.c.l.b16 %v96
    %v152 = vunpack.c.l.b16 %v97
    %v153 = vunpack.c.l.b16 %v98
    %v154 = vpack.c.b16 %v139, %v138
    %v155 = vpack.c.b16 %v141, %v140
    %v156 = vpack.c.b16 %v143, %v142
    %v157 = vpack.c.b16 %v145, %v144
    %v158 = vpack.c.b16 %v147, %v146
    %v159 = vpack.c.b16 %v149, %v148
    %v160 = vpack.c.b16 %v151, %v150
    %v161 = vpack.c.b16 %v153, %v152
    %v186 = vunpack.c.l.b16 %v99
    %v187 = vunpack.c.l.b16 %v100
    %v188 = vunpack.c.l.b16 %v101
    %v189 = vunpack.c.l.b16 %v102
    %v190 = vunpack.c.l.b16 %v103
    %v191 = vunpack.c.l.b16 %v104
    %v192 = vunpack.c.l.b16 %v105
    %v193 = vunpack.c.l.b16 %v106
    %v194 = vunpack.c.l.b16 %v107
    %v195 = vunpack.c.l.b16 %v108
    %v196 = vunpack.c.l.b16 %v109
    %v197 = vunpack.c.l.b16 %v110
    %v198 = vunpack.c.l.b16 %v111
    %v199 = vunpack.c.l.b16 %v112
    %v200 = vunpack.c.l.b16 %v113
    %v201 = vunpack.c.l.b16 %v114
    %v202 = vpack.c.b16 %v187, %v186
    %v203 = vpack.c.b16 %v189, %v188
    %v204 = vpack.c.b16 %v191, %v190
    %v205 = vpack.c.b16 %v193, %v192
    %v206 = vpack.c.b16 %v195, %v194
    %v207 = vpack.c.b16 %v197, %v196
    %v208 = vpack.c.b16 %v199, %v198
    %v209 = vpack.c.b16 %v201, %v200
    %218 = vmatprep.subr.bf16.mxu0 0
    %219 = vmatpush1.bf16.msra.mxu0 %v209
    %220 = vmatprep.subr.bf16.mxu0 0
    %221 = vmatpush1.bf16.msra.mxu0 %v208
    %222 = vmatprep.subr.bf16.mxu0 0
    %223 = vmatpush1.bf16.msra.mxu0 %v207
    %224 = vmatprep.subr.bf16.mxu0 0
    %225 = vmatpush1.bf16.msra.mxu0 %v206
    %226 = vmatprep.subr.bf16.mxu0 0
    %227 = vmatpush1.bf16.msra.mxu0 %v205
    %228 = vmatprep.subr.bf16.mxu0 0
    %229 = vmatpush1.bf16.msra.mxu0 %v204
    %230 = vmatprep.subr.bf16.mxu0 0
    %231 = vmatpush1.bf16.msra.mxu0 %v203
    %232 = vmatprep.subr.bf16.mxu0 0
    %233 = vmatpush1.bf16.msra.mxu0 %v202
    %234 = vmatprep.subr.bf16.mxu0 0
    %235 = vmatpush2.bf16.msra.mxu0 0
    %236 = vmatprep.subr.bf16.mxu0 0
    %237 = vmatpush2.bf16.msra.mxu0 0
    %238 = vmatprep.subr.bf16.mxu0 0
    %239 = vmatpush2.bf16.msra.mxu0 0
    %240 = vmatprep.subr.bf16.mxu0 0
    %241 = vmatpush2.bf16.msra.mxu0 0
    %242 = vmatprep.subr.bf16.mxu0 0
    %243 = vmatpush2.bf16.msra.mxu0 0
    %244 = vmatprep.subr.bf16.mxu0 0
    %245 = vmatpush2.bf16.msra.mxu0 0
    %246 = vmatprep.subr.bf16.mxu0 0
    %247 = vmatpush2.bf16.msra.mxu0 0
    %248 = vmatprep.subr.bf16.mxu0 0
    %249 = vmatpush2.bf16.msra.mxu0 0
    %250 = vmatprep.mubr.bf16.mxu0 0
    %251 = vmatmul.mubr.bf16.gmra.mxu0 %v154
    %v252 = vpop.f32.mrf.mxu0
    %v253 = vadd.f32 %v120, %v252
    %v254 = vpop.f32.mrf.mxu0
    %v255 = vpop.f32.mrf.mxu0
    %v256 = vadd.f32 %v120, %v255
    %v257 = vpop.f32.mrf.mxu0
    %258 = vmatprep.mubr.bf16.mxu0 0
    %259 = vmatmul.mubr.bf16.gmra.mxu0 %v155
    %v260 = vpop.f32.mrf.mxu0
    %v261 = vadd.f32 %v120, %v260
    %v262 = vpop.f32.mrf.mxu0
    %v263 = vpop.f32.mrf.mxu0
    %v264 = vadd.f32 %v120, %v263
    %v265 = vpop.f32.mrf.mxu0
    %266 = vmatprep.mubr.bf16.mxu0 0
    %267 = vmatmul.mubr.bf16.gmra.mxu0 %v156
    %v268 = vpop.f32.mrf.mxu0
    %v269 = vadd.f32 %v120, %v268
    %v270 = vpop.f32.mrf.mxu0
    %v271 = vpop.f32.mrf.mxu0
    %v272 = vadd.f32 %v120, %v271
    %v273 = vpop.f32.mrf.mxu0
    %274 = vmatprep.mubr.bf16.mxu0 0
    %275 = vmatmul.mubr.bf16.gmra.mxu0 %v157
    %v276 = vpop.f32.mrf.mxu0
    %v277 = vadd.f32 %v120, %v276
    %v278 = vpop.f32.mrf.mxu0
    %v279 = vpop.f32.mrf.mxu0
    %v280 = vadd.f32 %v120, %v279
    %v281 = vpop.f32.mrf.mxu0
    %282 = vmatprep.mubr.bf16.mxu0 0
    %283 = vmatmul.mubr.bf16.gmra.mxu0 %v158
    %v284 = vpop.f32.mrf.mxu0
    %v285 = vadd.f32 %v120, %v284
    %v286 = vpop.f32.mrf.mxu0
    %v287 = vpop.f32.mrf.mxu0
    %v288 = vadd.f32 %v120, %v287
    %v289 = vpop.f32.mrf.mxu0
    %290 = vmatprep.mubr.bf16.mxu0 0
    %291 = vmatmul.mubr.bf16.gmra.mxu0 %v159
    %v292 = vpop.f32.mrf.mxu0
    %v293 = vadd.f32 %v120, %v292
    %v294 = vpop.f32.mrf.mxu0
    %v295 = vpop.f32.mrf.mxu0
    %v296 = vadd.f32 %v120, %v295
    %v297 = vpop.f32.mrf.mxu0
    %298 = vmatprep.mubr.bf16.mxu0 0
    %299 = vmatmul.mubr.bf16.gmra.mxu0 %v160
    %v300 = vpop.f32.mrf.mxu0
    %v301 = vadd.f32 %v120, %v300
    %v302 = vpop.f32.mrf.mxu0
    %v303 = vpop.f32.mrf.mxu0
    %v304 = vadd.f32 %v120, %v303
    %v305 = vpop.f32.mrf.mxu0
    %306 = vmatprep.mubr.bf16.mxu0 0
    %307 = vmatmul.mubr.bf16.gmra.mxu0 %v161
    %v308 = vpop.f32.mrf.mxu0
    %v309 = vadd.f32 %v120, %v308
    %v310 = vpop.f32.mrf.mxu0
    %v311 = vpop.f32.mrf.mxu0
    %v312 = vadd.f32 %v120, %v311
    %v313 = vpop.f32.mrf.mxu0
    %314 = vdwg.mxu0
    %v315 = vmax.f32 %v253, 0.0
    %v316 = vmax.f32 %v256, 0.0
    %v317 = vmax.f32 %v261, 0.0
    %v318 = vmax.f32 %v264, 0.0
    %v319 = vmax.f32 %v269, 0.0
    %v320 = vmax.f32 %v272, 0.0
    %v321 = vmax.f32 %v277, 0.0
    %v322 = vmax.f32 %v280, 0.0
    %v323 = vmax.f32 %v285, 0.0
    %v324 = vmax.f32 %v288, 0.0
    %v325 = vmax.f32 %v293, 0.0
    %v326 = vmax.f32 %v296, 0.0
    %v327 = vmax.f32 %v301, 0.0
    %v328 = vmax.f32 %v304, 0.0
    %v329 = vmax.f32 %v309, 0.0
    %v330 = vmax.f32 %v312, 0.0
    %v331 = vpack.c.bf16 %v316, %v315
    %v332 = vpack.c.bf16 %v318, %v317
    %v333 = vpack.c.bf16 %v320, %v319
    %v334 = vpack.c.bf16 %v322, %v321
    %v335 = vpack.c.bf16 %v324, %v323
    %v336 = vpack.c.bf16 %v326, %v325
    %v337 = vpack.c.bf16 %v328, %v327
    %v338 = vpack.c.bf16 %v330, %v329
    %v339 = vld [vmem:[#allocation7] sm:$0xff]
    %v340 = vld [vmem:[#allocation7 + $0x8] sm:$0xff]
    %v341 = vld [vmem:[#allocation7 + $0x10] sm:$0xff]
    %v342 = vld [vmem:[#allocation7 + $0x18] sm:$0xff]
    %v343 = vld [vmem:[#allocation7 + $0x20] sm:$0xff]
    %v344 = vld [vmem:[#allocation7 + $0x28] sm:$0xff]
    %v345 = vld [vmem:[#allocation7 + $0x30] sm:$0xff]
    %v346 = vld [vmem:[#allocation7 + $0x38] sm:$0xff]
    %v347 = vld [vmem:[#allocation7 + $0x40] sm:$0xff]
    %v348 = vld [vmem:[#allocation7 + $0x48] sm:$0xff]
    %v349 = vld [vmem:[#allocation7 + $0x50] sm:$0xff]
    %v350 = vld [vmem:[#allocation7 + $0x58] sm:$0xff]
    %v351 = vld [vmem:[#allocation7 + $0x60] sm:$0xff]
    %v352 = vld [vmem:[#allocation7 + $0x68] sm:$0xff]
    %v353 = vld [vmem:[#allocation7 + $0x70] sm:$0xff]
    %v354 = vld [vmem:[#allocation7 + $0x78] sm:$0xff]
    %v355 = vld [vmem:[%s4] sm:$0x3]
    %v357 = vlaneseq
    %v358 = vshrl.u32 %v357, 7
    %v359 = vsub.s32 0, %v358
    %v360 = vrot.slane %v355, %v359
    %v361 = vlaneseq
    %v362 = vshrl.u32 %v361, 7
    %v363 = vsub.s32 1, %v362
    %v364 = vrot.slane %v355, %v363
    %v383 = vunpack.c.l.b16 %v339
    %v384 = vunpack.c.h.b16 %v339
    %v385 = vunpack.c.l.b16 %v340
    %v386 = vunpack.c.h.b16 %v340
    %v387 = vunpack.c.l.b16 %v341
    %v388 = vunpack.c.h.b16 %v341
    %v389 = vunpack.c.l.b16 %v342
    %v390 = vunpack.c.h.b16 %v342
    %v391 = vunpack.c.l.b16 %v343
    %v392 = vunpack.c.h.b16 %v343
    %v393 = vunpack.c.l.b16 %v344
    %v394 = vunpack.c.h.b16 %v344
    %v395 = vunpack.c.l.b16 %v345
    %v396 = vunpack.c.h.b16 %v345
    %v397 = vunpack.c.l.b16 %v346
    %v398 = vunpack.c.h.b16 %v346
    %v399 = vunpack.c.l.b16 %v347
    %v400 = vunpack.c.h.b16 %v347
    %v401 = vunpack.c.l.b16 %v348
    %v402 = vunpack.c.h.b16 %v348
    %v403 = vunpack.c.l.b16 %v349
    %v404 = vunpack.c.h.b16 %v349
    %v405 = vunpack.c.l.b16 %v350
    %v406 = vunpack.c.h.b16 %v350
    %v407 = vunpack.c.l.b16 %v351
    %v408 = vunpack.c.h.b16 %v351
    %v409 = vunpack.c.l.b16 %v352
    %v410 = vunpack.c.h.b16 %v352
    %v411 = vunpack.c.l.b16 %v353
    %v412 = vunpack.c.h.b16 %v353
    %v413 = vunpack.c.l.b16 %v354
    %v414 = vunpack.c.h.b16 %v354
    %v415 = vpack.c.b16 %v385, %v383
    %v416 = vpack.c.b16 %v386, %v384
    %v417 = vpack.c.b16 %v389, %v387
    %v418 = vpack.c.b16 %v390, %v388
    %v419 = vpack.c.b16 %v393, %v391
    %v420 = vpack.c.b16 %v394, %v392
    %v421 = vpack.c.b16 %v397, %v395
    %v422 = vpack.c.b16 %v398, %v396
    %v423 = vpack.c.b16 %v401, %v399
    %v424 = vpack.c.b16 %v402, %v400
    %v425 = vpack.c.b16 %v405, %v403
    %v426 = vpack.c.b16 %v406, %v404
    %v427 = vpack.c.b16 %v409, %v407
    %v428 = vpack.c.b16 %v410, %v408
    %v429 = vpack.c.b16 %v413, %v411
    %v430 = vpack.c.b16 %v414, %v412
    %447 = vmatprep.subr.bf16.mxu0 %v430
    %448 = vmatpush1.bf16.msra.mxu0 %v429
    %449 = vmatprep.subr.bf16.mxu0 %v428
    %450 = vmatpush1.bf16.msra.mxu0 %v427
    %451 = vmatprep.subr.bf16.mxu0 %v426
    %452 = vmatpush1.bf16.msra.mxu0 %v425
    %453 = vmatprep.subr.bf16.mxu0 %v424
    %454 = vmatpush1.bf16.msra.mxu0 %v423
    %455 = vmatprep.subr.bf16.mxu0 %v422
    %456 = vmatpush1.bf16.msra.mxu0 %v421
    %457 = vmatprep.subr.bf16.mxu0 %v420
    %458 = vmatpush1.bf16.msra.mxu0 %v419
    %459 = vmatprep.subr.bf16.mxu0 %v418
    %460 = vmatpush1.bf16.msra.mxu0 %v417
    %461 = vmatprep.subr.bf16.mxu0 %v416
    %462 = vmatpush1.bf16.msra.mxu0 %v415
    %463 = vmatprep.subr.bf16.mxu0 0
    %464 = vmatpush2.bf16.msra.mxu0 0
    %465 = vmatprep.subr.bf16.mxu0 0
    %466 = vmatpush2.bf16.msra.mxu0 0
    %467 = vmatprep.subr.bf16.mxu0 0
    %468 = vmatpush2.bf16.msra.mxu0 0
    %469 = vmatprep.subr.bf16.mxu0 0
    %470 = vmatpush2.bf16.msra.mxu0 0
    %471 = vmatprep.subr.bf16.mxu0 0
    %472 = vmatpush2.bf16.msra.mxu0 0
    %473 = vmatprep.subr.bf16.mxu0 0
    %474 = vmatpush2.bf16.msra.mxu0 0
    %475 = vmatprep.subr.bf16.mxu0 0
    %476 = vmatpush2.bf16.msra.mxu0 0
    %477 = vmatprep.subr.bf16.mxu0 0
    %478 = vmatpush2.bf16.msra.mxu0 0
    %479 = vmatprep.mubr.bf16.mxu0 0
    %480 = vmatmul.mubr.bf16.gmra.mxu0 %v331
    %v481 = vpop.f32.mrf.mxu0
    %v482 = vadd.f32 %v360, %v481
    %v483 = vpop.f32.mrf.mxu0
    %v484 = vadd.f32 %v364, %v483
    %v485 = vpop.f32.mrf.mxu0
    %v486 = vadd.f32 %v360, %v485
    %v487 = vpop.f32.mrf.mxu0
    %v488 = vadd.f32 %v364, %v487
    %489 = vmatprep.mubr.bf16.mxu0 0
    %490 = vmatmul.mubr.bf16.gmra.mxu0 %v332
    %v491 = vpop.f32.mrf.mxu0
    %v492 = vadd.f32 %v360, %v491
    %v493 = vpop.f32.mrf.mxu0
    %v494 = vadd.f32 %v364, %v493
    %v495 = vpop.f32.mrf.mxu0
    %v496 = vadd.f32 %v360, %v495
    %v497 = vpop.f32.mrf.mxu0
    %v498 = vadd.f32 %v364, %v497
    %499 = vmatprep.mubr.bf16.mxu0 0
    %500 = vmatmul.mubr.bf16.gmra.mxu0 %v333
    %v501 = vpop.f32.mrf.mxu0
    %v502 = vadd.f32 %v360, %v501
    %v503 = vpop.f32.mrf.mxu0
    %v504 = vadd.f32 %v364, %v503
    %v505 = vpop.f32.mrf.mxu0
    %v506 = vadd.f32 %v360, %v505
    %v507 = vpop.f32.mrf.mxu0
    %v508 = vadd.f32 %v364, %v507
    %509 = vmatprep.mubr.bf16.mxu0 0
    %510 = vmatmul.mubr.bf16.gmra.mxu0 %v334
    %v511 = vpop.f32.mrf.mxu0
    %v512 = vadd.f32 %v360, %v511
    %v513 = vpop.f32.mrf.mxu0
    %v514 = vadd.f32 %v364, %v513
    %v515 = vpop.f32.mrf.mxu0
    %v516 = vadd.f32 %v360, %v515
    %v517 = vpop.f32.mrf.mxu0
    %v518 = vadd.f32 %v364, %v517
    %519 = vmatprep.mubr.bf16.mxu0 0
    %520 = vmatmul.mubr.bf16.gmra.mxu0 %v335
    %v521 = vpop.f32.mrf.mxu0
    %v522 = vadd.f32 %v360, %v521
    %v523 = vpop.f32.mrf.mxu0
    %v524 = vadd.f32 %v364, %v523
    %v525 = vpop.f32.mrf.mxu0
    %v526 = vadd.f32 %v360, %v525
    %v527 = vpop.f32.mrf.mxu0
    %v528 = vadd.f32 %v364, %v527
    %529 = vmatprep.mubr.bf16.mxu0 0
    %530 = vmatmul.mubr.bf16.gmra.mxu0 %v336
    %v531 = vpop.f32.mrf.mxu0
    %v532 = vadd.f32 %v360, %v531
    %v533 = vpop.f32.mrf.mxu0
    %v534 = vadd.f32 %v364, %v533
    %v535 = vpop.f32.mrf.mxu0
    %v536 = vadd.f32 %v360, %v535
    %v537 = vpop.f32.mrf.mxu0
    %v538 = vadd.f32 %v364, %v537
    %539 = vmatprep.mubr.bf16.mxu0 0
    %540 = vmatmul.mubr.bf16.gmra.mxu0 %v337
    %v541 = vpop.f32.mrf.mxu0
    %v542 = vadd.f32 %v360, %v541
    %v543 = vpop.f32.mrf.mxu0
    %v544 = vadd.f32 %v364, %v543
    %v545 = vpop.f32.mrf.mxu0
    %v546 = vadd.f32 %v360, %v545
    %v547 = vpop.f32.mrf.mxu0
    %v548 = vadd.f32 %v364, %v547
    %549 = vmatprep.mubr.bf16.mxu0 0
    %550 = vmatmul.mubr.bf16.gmra.mxu0 %v338
    %v551 = vpop.f32.mrf.mxu0
    %v552 = vadd.f32 %v360, %v551
    %v553 = vpop.f32.mrf.mxu0
    %v554 = vadd.f32 %v364, %v553
    %v555 = vpop.f32.mrf.mxu0
    %v556 = vadd.f32 %v360, %v555
    %v557 = vpop.f32.mrf.mxu0
    %v558 = vadd.f32 %v364, %v557
    %559 = vdwg.mxu0
    %v560 = vmax.f32 %v482, 0.0
    %v561 = vmax.f32 %v484, 0.0
    %v562 = vmax.f32 %v486, 0.0
    %v563 = vmax.f32 %v488, 0.0
    %v564 = vmax.f32 %v492, 0.0
    %v565 = vmax.f32 %v494, 0.0
    %v566 = vmax.f32 %v496, 0.0
    %v567 = vmax.f32 %v498, 0.0
    %v568 = vmax.f32 %v502, 0.0
    %v569 = vmax.f32 %v504, 0.0
    %v570 = vmax.f32 %v506, 0.0
    %v571 = vmax.f32 %v508, 0.0
    %v572 = vmax.f32 %v512, 0.0
    %v573 = vmax.f32 %v514, 0.0
    %v574 = vmax.f32 %v516, 0.0
    %v575 = vmax.f32 %v518, 0.0
    %v576 = vmax.f32 %v522, 0.0
    %v577 = vmax.f32 %v524, 0.0
    %v578 = vmax.f32 %v526, 0.0
    %v579 = vmax.f32 %v528, 0.0
    %v580 = vmax.f32 %v532, 0.0
    %v581 = vmax.f32 %v534, 0.0
    %v582 = vmax.f32 %v536, 0.0
    %v583 = vmax.f32 %v538, 0.0
    %v584 = vmax.f32 %v542, 0.0
    %v585 = vmax.f32 %v544, 0.0
    %v586 = vmax.f32 %v546, 0.0
    %v587 = vmax.f32 %v548, 0.0
    %v588 = vmax.f32 %v552, 0.0
    %v589 = vmax.f32 %v554, 0.0
    %v590 = vmax.f32 %v556, 0.0
    %v591 = vmax.f32 %v558, 0.0
    %v592 = vpack.c.bf16 %v562, %v560
    %v593 = vpack.c.bf16 %v563, %v561
    %v594 = vpack.c.bf16 %v566, %v564
    %v595 = vpack.c.bf16 %v567, %v565
    %v596 = vpack.c.bf16 %v570, %v568
    %v597 = vpack.c.bf16 %v571, %v569
    %v598 = vpack.c.bf16 %v574, %v572
    %v599 = vpack.c.bf16 %v575, %v573
    %v600 = vpack.c.bf16 %v578, %v576
    %v601 = vpack.c.bf16 %v579, %v577
    %v602 = vpack.c.bf16 %v582, %v580
    %v603 = vpack.c.bf16 %v583, %v581
    %v604 = vpack.c.bf16 %v586, %v584
    %v605 = vpack.c.bf16 %v587, %v585
    %v606 = vpack.c.bf16 %v590, %v588
    %v607 = vpack.c.bf16 %v591, %v589
    %v608 = vld [vmem:[#allocation8] sm:$0xf]
    %v609 = vld [vmem:[#allocation8 + $0x4] sm:$0xf]
    %v610 = vld [vmem:[#allocation8 + $0x8] sm:$0xf]
    %v611 = vld [vmem:[#allocation8 + $0xc] sm:$0xf]
    %v612 = vld [vmem:[#allocation8 + $0x10] sm:$0xf]
    %v613 = vld [vmem:[#allocation8 + $0x14] sm:$0xf]
    %v614 = vld [vmem:[#allocation8 + $0x18] sm:$0xf]
    %v615 = vld [vmem:[#allocation8 + $0x1c] sm:$0xf]
    %v616 = vld [vmem:[#allocation8 + $0x20] sm:$0xf]
    %v617 = vld [vmem:[#allocation8 + $0x24] sm:$0xf]
    %v618 = vld [vmem:[#allocation8 + $0x28] sm:$0xf]
    %v619 = vld [vmem:[#allocation8 + $0x2c] sm:$0xf]
    %v620 = vld [vmem:[#allocation8 + $0x30] sm:$0xf]
    %v621 = vld [vmem:[#allocation8 + $0x34] sm:$0xf]
    %v622 = vld [vmem:[#allocation8 + $0x38] sm:$0xf]
    %v623 = vld [vmem:[#allocation8 + $0x3c] sm:$0xf]
    %v624 = vld [vmem:[#allocation8 + $0x40] sm:$0xf]
    %v625 = vld [vmem:[#allocation8 + $0x44] sm:$0xf]
    %v626 = vld [vmem:[#allocation8 + $0x48] sm:$0xf]
    %v627 = vld [vmem:[#allocation8 + $0x4c] sm:$0xf]
    %v628 = vld [vmem:[#allocation8 + $0x50] sm:$0xf]
    %v629 = vld [vmem:[#allocation8 + $0x54] sm:$0xf]
    %v630 = vld [vmem:[#allocation8 + $0x58] sm:$0xf]
    %v631 = vld [vmem:[#allocation8 + $0x5c] sm:$0xf]
    %v632 = vld [vmem:[#allocation8 + $0x60] sm:$0xf]
    %v633 = vld [vmem:[#allocation8 + $0x64] sm:$0xf]
    %v634 = vld [vmem:[#allocation8 + $0x68] sm:$0xf]
    %v635 = vld [vmem:[#allocation8 + $0x6c] sm:$0xf]
    %v636 = vld [vmem:[#allocation8 + $0x70] sm:$0xf]
    %v637 = vld [vmem:[#allocation8 + $0x74] sm:$0xf]
    %v638 = vld [vmem:[#allocation8 + $0x78] sm:$0xf]
    %v639 = vld [vmem:[#allocation8 + $0x7c] sm:$0xf]
    %v640 = vld [vmem:[%s6] sm:$0x1]
    %v642 = vlaneseq
    %v643 = vshrl.u32 %v642, 7
    %v644 = vsub.s32 0, %v643
    %v645 = vrot.slane %v640, %v644
    %v679 = vunpack.c.l.b16 %v608
    %v680 = vunpack.c.l.b16 %v609
    %v681 = vunpack.c.l.b16 %v610
    %v682 = vunpack.c.l.b16 %v611
    %v683 = vunpack.c.l.b16 %v612
    %v684 = vunpack.c.l.b16 %v613
    %v685 = vunpack.c.l.b16 %v614
    %v686 = vunpack.c.l.b16 %v615
    %v687 = vunpack.c.l.b16 %v616
    %v688 = vunpack.c.l.b16 %v617
    %v689 = vunpack.c.l.b16 %v618
    %v690 = vunpack.c.l.b16 %v619
    %v691 = vunpack.c.l.b16 %v620
    %v692 = vunpack.c.l.b16 %v621
    %v693 = vunpack.c.l.b16 %v622
    %v694 = vunpack.c.l.b16 %v623
    %v695 = vunpack.c.l.b16 %v624
    %v696 = vunpack.c.l.b16 %v625
    %v697 = vunpack.c.l.b16 %v626
    %v698 = vunpack.c.l.b16 %v627
    %v699 = vunpack.c.l.b16 %v628
    %v700 = vunpack.c.l.b16 %v629
    %v701 = vunpack.c.l.b16 %v630
    %v702 = vunpack.c.l.b16 %v631
    %v703 = vunpack.c.l.b16 %v632
    %v704 = vunpack.c.l.b16 %v633
    %v705 = vunpack.c.l.b16 %v634
    %v706 = vunpack.c.l.b16 %v635
    %v707 = vunpack.c.l.b16 %v636
    %v708 = vunpack.c.l.b16 %v637
    %v709 = vunpack.c.l.b16 %v638
    %v710 = vunpack.c.l.b16 %v639
    %v711 = vpack.c.b16 %v680, %v679
    %v712 = vpack.c.b16 %v682, %v681
    %v713 = vpack.c.b16 %v684, %v683
    %v714 = vpack.c.b16 %v686, %v685
    %v715 = vpack.c.b16 %v688, %v687
    %v716 = vpack.c.b16 %v690, %v689
    %v717 = vpack.c.b16 %v692, %v691
    %v718 = vpack.c.b16 %v694, %v693
    %v719 = vpack.c.b16 %v696, %v695
    %v720 = vpack.c.b16 %v698, %v697
    %v721 = vpack.c.b16 %v700, %v699
    %v722 = vpack.c.b16 %v702, %v701
    %v723 = vpack.c.b16 %v704, %v703
    %v724 = vpack.c.b16 %v706, %v705
    %v725 = vpack.c.b16 %v708, %v707
    %v726 = vpack.c.b16 %v710, %v709
    %743 = vmatprep.subr.bf16.mxu0 0
    %744 = vmatpush1.bf16.msra.mxu0 %v718
    %745 = vmatprep.subr.bf16.mxu0 0
    %746 = vmatpush1.bf16.msra.mxu0 %v717
    %747 = vmatprep.subr.bf16.mxu0 0
    %748 = vmatpush1.bf16.msra.mxu0 %v716
    %749 = vmatprep.subr.bf16.mxu0 0
    %750 = vmatpush1.bf16.msra.mxu0 %v715
    %751 = vmatprep.subr.bf16.mxu0 0
    %752 = vmatpush1.bf16.msra.mxu0 %v714
    %753 = vmatprep.subr.bf16.mxu0 0
    %754 = vmatpush1.bf16.msra.mxu0 %v713
    %755 = vmatprep.subr.bf16.mxu0 0
    %756 = vmatpush1.bf16.msra.mxu0 %v712
    %757 = vmatprep.subr.bf16.mxu0 0
    %758 = vmatpush1.bf16.msra.mxu0 %v711
    %759 = vmatprep.subr.bf16.mxu0 0
    %760 = vmatpush2.bf16.msra.mxu0 %v726
    %761 = vmatprep.subr.bf16.mxu0 0
    %762 = vmatpush2.bf16.msra.mxu0 %v725
    %763 = vmatprep.subr.bf16.mxu0 0
    %764 = vmatpush2.bf16.msra.mxu0 %v724
    %765 = vmatprep.subr.bf16.mxu0 0
    %766 = vmatpush2.bf16.msra.mxu0 %v723
    %767 = vmatprep.subr.bf16.mxu0 0
    %768 = vmatpush2.bf16.msra.mxu0 %v722
    %769 = vmatprep.subr.bf16.mxu0 0
    %770 = vmatpush2.bf16.msra.mxu0 %v721
    %771 = vmatprep.subr.bf16.mxu0 0
    %772 = vmatpush2.bf16.msra.mxu0 %v720
    %773 = vmatprep.subr.bf16.mxu0 0
    %774 = vmatpush2.bf16.msra.mxu0 %v719
    %775 = vmatprep.mubr.bf16.mxu0 %v593
    %776 = vmatmul.mubr.bf16.gmra.mxu0 %v592
    %v777 = vpop.f32.mrf.mxu0
    %v778 = vadd.f32 %v645, %v777
    %v779 = vpop.f32.mrf.mxu0
    %v780 = vpop.f32.mrf.mxu0
    %v781 = vadd.f32 %v645, %v780
    %v782 = vpop.f32.mrf.mxu0
    %783 = vmatprep.mubr.bf16.mxu0 %v595
    %784 = vmatmul.mubr.bf16.gmra.mxu0 %v594
    %v785 = vpop.f32.mrf.mxu0
    %v786 = vadd.f32 %v645, %v785
    %v787 = vpop.f32.mrf.mxu0
    %v788 = vpop.f32.mrf.mxu0
    %v789 = vadd.f32 %v645, %v788
    %v790 = vpop.f32.mrf.mxu0
    %791 = vmatprep.mubr.bf16.mxu0 %v597
    %792 = vmatmul.mubr.bf16.gmra.mxu0 %v596
    %v793 = vpop.f32.mrf.mxu0
    %v794 = vadd.f32 %v645, %v793
    %v795 = vpop.f32.mrf.mxu0
    %v796 = vpop.f32.mrf.mxu0
    %v797 = vadd.f32 %v645, %v796
    %v798 = vpop.f32.mrf.mxu0
    %799 = vmatprep.mubr.bf16.mxu0 %v599
    %800 = vmatmul.mubr.bf16.gmra.mxu0 %v598
    %v801 = vpop.f32.mrf.mxu0
    %v802 = vadd.f32 %v645, %v801
    %v803 = vpop.f32.mrf.mxu0
    %v804 = vpop.f32.mrf.mxu0
    %v805 = vadd.f32 %v645, %v804
    %v806 = vpop.f32.mrf.mxu0
    %807 = vmatprep.mubr.bf16.mxu0 %v601
    %808 = vmatmul.mubr.bf16.gmra.mxu0 %v600
    %v809 = vpop.f32.mrf.mxu0
    %v810 = vadd.f32 %v645, %v809
    %v811 = vpop.f32.mrf.mxu0
    %v812 = vpop.f32.mrf.mxu0
    %v813 = vadd.f32 %v645, %v812
    %v814 = vpop.f32.mrf.mxu0
    %815 = vmatprep.mubr.bf16.mxu0 %v603
    %816 = vmatmul.mubr.bf16.gmra.mxu0 %v602
    %v817 = vpop.f32.mrf.mxu0
    %v818 = vadd.f32 %v645, %v817
    %v819 = vpop.f32.mrf.mxu0
    %v820 = vpop.f32.mrf.mxu0
    %v821 = vadd.f32 %v645, %v820
    %v822 = vpop.f32.mrf.mxu0
    %823 = vmatprep.mubr.bf16.mxu0 %v605
    %824 = vmatmul.mubr.bf16.gmra.mxu0 %v604
    %v825 = vpop.f32.mrf.mxu0
    %v826 = vadd.f32 %v645, %v825
    %v827 = vpop.f32.mrf.mxu0
    %v828 = vpop.f32.mrf.mxu0
    %v829 = vadd.f32 %v645, %v828
    %v830 = vpop.f32.mrf.mxu0
    %831 = vmatprep.mubr.bf16.mxu0 %v607
    %832 = vmatmul.mubr.bf16.gmra.mxu0 %v606
    %v833 = vpop.f32.mrf.mxu0
    %v834 = vadd.f32 %v645, %v833
    %v835 = vpop.f32.mrf.mxu0
    %v836 = vpop.f32.mrf.mxu0
    %v837 = vadd.f32 %v645, %v836
    %v838 = vpop.f32.mrf.mxu0
    %839 = vdwg.mxu0
    %840 = vst [vmem:[#allocation10] sm:$0xff] %v778
    %841 = vst [vmem:[#allocation10 + $0x8] sm:$0xff] %v781
    %842 = vst [vmem:[#allocation10 + $0x10] sm:$0xff] %v786
    %843 = vst [vmem:[#allocation10 + $0x18] sm:$0xff] %v789
    %844 = vst [vmem:[#allocation10 + $0x20] sm:$0xff] %v794
    %845 = vst [vmem:[#allocation10 + $0x28] sm:$0xff] %v797
    %846 = vst [vmem:[#allocation10 + $0x30] sm:$0xff] %v802
    %847 = vst [vmem:[#allocation10 + $0x38] sm:$0xff] %v805
    %848 = vst [vmem:[#allocation10 + $0x40] sm:$0xff] %v810
    %849 = vst [vmem:[#allocation10 + $0x48] sm:$0xff] %v813
    %850 = vst [vmem:[#allocation10 + $0x50] sm:$0xff] %v818
    %851 = vst [vmem:[#allocation10 + $0x58] sm:$0xff] %v821
    %852 = vst [vmem:[#allocation10 + $0x60] sm:$0xff] %v826
    %853 = vst [vmem:[#allocation10 + $0x68] sm:$0xff] %v829
    %854 = vst [vmem:[#allocation10 + $0x70] sm:$0xff] %v834
    %855 = vst [vmem:[#allocation10 + $0x78] sm:$0xff] %v837
    // Predicated region
    $region46: #{tpu_custom_call.1} parent=1 // pred_check
      _
    $region47: #{tpu_custom_call.1} parent=1 // pred_check_branch
      %857 = sbr.rel (0) target = $region49
    $region48: #{tpu_custom_call.1} parent=1 // pred_region
      %s859 = ssub.s32 2048, 2048
      %860 = vsyncadd [#allocation4], %s859
      %s861 = sshll.u32 [#allocation10], 4
      %s862 = int_to_ptr.vmem [resolvable:$true] %s861
      %867 = dma.vmem_to_hbm [thread:$0]  %s862, 2048, %s7, [#allocation4], 128, 128, 8
    $region49: #{tpu_custom_call.1} parent=1 // pred_fallthru
      _
    // Predicated region
    $region50: #{tpu_custom_call.1} parent=1 // pred_check
      _
    $region51: #{tpu_custom_call.1} parent=1 // pred_check_branch
      %869 = sbr.rel (0) target = $region53
    $region52: #{tpu_custom_call.1} parent=1 // pred_region
      %870 = dma.done [#allocation4], 2048
    $region53: #{tpu_custom_call.1} parent=1 // pred_fallthru
      _
    %871 = vsyncpa [#allocation3], 1
    %872 = vsyncpa [#allocation6], 1
    %873 = vsyncpa [#allocation9], 1
    %874 = vsyncpa [#allocation4], 1

</llo_original>
